<compile_context>
chip_gen: v5e
topology: v5e:2x2
jax: 0.10.0
libtpu: 0.0.40
codegen_flags: <defaults>
</compile_context>

<pallas_src>
import functools

import jax
import jax.numpy as jnp
from jax import lax
from jax.experimental import pallas as pl
from jax.experimental.pallas import tpu as pltpu


def _lstm_att_kernel(xg_ref,       # (Tc, B, 4H) streamed pre-activations, gate order (i,f,o,g),
                                   #             i/f/o columns pre-scaled by 0.5 (sigmoid-via-tanh)
                     whh_ref,      # (H, 4H)     fused hidden->gate weights (i,f,o,g), same scaling
                     attw_ref,     # (H, T)      attention fc weight (transposed)
                     attb_ref,     # (1, T)      attention fc bias
                     fcw_ref,      # (H, O)      output fc weight (transposed)
                     fcb_ref,      # (1, O)      output fc bias
                     scores_ref,   # (B, O)      output: class scores
                     att_ref,      # (B, T)      output: attention weights
                     out_sc,       # VMEM scratch (T, B, H): all LSTM hidden states
                     h_sc,         # VMEM scratch (B, H): hidden-state carry across chunks
                     c_sc,         # VMEM scratch (B, H): cell-state carry across chunks
                     *, chunk, seq_len, hidden):
    H = hidden
    t_blk = pl.program_id(0)
    n_blk = pl.num_programs(0)

    # ---- init carries on the first chunk ----
    @pl.when(t_blk == 0)
    def _():
        h_sc[...] = jnp.zeros_like(h_sc)
        c_sc[...] = jnp.zeros_like(c_sc)

    # Loop-invariant weight read hoisted off the per-step serial chain.
    whh = whh_ref[...]                                                    # (H, 4H)
    base = t_blk * chunk

    # ---- LSTM recurrence over this chunk (unrolled: short, static trip count) ----
    def step(tl, carry):
        h_prev, c_prev = carry
        gates = xg_ref[tl] + jnp.dot(h_prev, whh,
                                     preferred_element_type=jnp.float32)  # (B, 4H)
        # Single EUP push for all four gates: i/f/o pre-activations arrive
        # pre-scaled by 0.5, so tanh gives tanh(x/2) there and tanh(x) for g.
        t_all = jnp.tanh(gates)                                           # (B, 4H)
        sig = 0.5 * t_all[:, :3 * H] + 0.5                                # sigmoid(i,f,o)
        i_g = sig[:, 0 * H:1 * H]
        f_g = sig[:, 1 * H:2 * H]
        o_g = sig[:, 2 * H:3 * H]
        g_g = t_all[:, 3 * H:4 * H]
        c_new = f_g * c_prev + i_g * g_g
        h_new = o_g * jnp.tanh(c_new)
        out_sc[base + tl] = h_new
        return (h_new, c_new)

    h_last, c_last = lax.fori_loop(0, chunk, step, (h_sc[...], c_sc[...]),
                                   unroll=True)
    h_sc[...] = h_last
    c_sc[...] = c_last

    # ---- attention epilogue: only on the last chunk ----
    @pl.when(t_blk == n_blk - 1)
    def _():
        # att = softmax(fc_attention(output[-1])) over the seq dim
        logits = (jnp.dot(h_last, attw_ref[...],
                          preferred_element_type=jnp.float32)
                  + attb_ref[...])                                        # (B, T)
        logits = logits - jnp.max(logits, axis=1, keepdims=True)
        e = jnp.exp(logits)
        att = e / jnp.sum(e, axis=1, keepdims=True)                       # exact divide
        att_ref[...] = att

        # weighted_output = sum_t output[t] * att[:, t]
        # Off the serial path and tiny: a static accumulate over T (pure aligned
        # VPU mul-adds, no MXU round-trip / no transpose).
        weighted = out_sc[0] * att[:, 0:1]
        for t in range(1, seq_len):
            weighted = weighted + out_sc[t] * att[:, t:t + 1]             # (B, H)

        # scores = fc(weighted_output)
        scores_ref[...] = (jnp.dot(weighted, fcw_ref[...],
                                   preferred_element_type=jnp.float32)
                           + fcb_ref[...])


def action_att_lstm_forward(input_x, params, *, chunk=None):
    """input_x: (batch, input_size, seq_len) float32. Returns (scores, att_weight)."""
    B, D, T = input_x.shape
    H = params['w_hh'].shape[1]
    O = params['fc_w'].shape[0]

    if chunk is None:
        chunk = 4 if T % 4 == 0 else (2 if T % 2 == 0 else 1)
    assert T % chunk == 0, "chunk must divide seq_len"

    x_tm = jnp.transpose(input_x, (2, 0, 1)).astype(jnp.float32)          # (T, B, D)

    # Fuse the 4H-stacked LSTM weights into one lane-dense slab, reordering the
    # PyTorch (i, f, g, o) gate layout to (i, f, o, g) so the sigmoid gates are
    # contiguous, and PRE-SCALE the i/f/o gates by 0.5 so the kernel can use a
    # single tanh for all four gates (sigmoid(x) = 0.5*tanh(x/2) + 0.5).
    def fuse_w(w):                       # (4H, K) stacked i,f,g,o -> (K, 4H) as i,f,o,g
        wi, wf, wg, wo = jnp.split(w.astype(jnp.float32), 4, axis=0)
        return jnp.concatenate([0.5 * wi, 0.5 * wf, 0.5 * wo, wg], axis=0).T

    def fuse_b(b):                       # (4H,) stacked i,f,g,o -> (1, 4H) as i,f,o,g
        bi, bf, bg, bo = jnp.split(b.astype(jnp.float32), 4)
        return jnp.concatenate([0.5 * bi, 0.5 * bf, 0.5 * bo, bg])[None, :]

    wih_f = fuse_w(params['w_ih'])                                        # (D, 4H)
    whh_f = fuse_w(params['w_hh'])                                        # (H, 4H)
    b_f = fuse_b(params['b_ih'] + params['b_hh'])                         # (1, 4H)

    # Hoisted input projection: ONE matmul for all timesteps (off the serial path).
    xg = (x_tm.reshape(T * B, D) @ wih_f + b_f).reshape(T, B, 4 * H)      # (T, B, 4H)

    attw = params['att_w'].T.astype(jnp.float32)                          # (H, T)
    attb = params['att_b'][None, :].astype(jnp.float32)                   # (1, T)
    fcw = params['fc_w'].T.astype(jnp.float32)                            # (H, O)
    fcb = params['fc_b'][None, :].astype(jnp.float32)                     # (1, O)

    kernel = functools.partial(_lstm_att_kernel, chunk=chunk, seq_len=T, hidden=H)

    scores, att = pl.pallas_call(
        kernel,
        out_shape=(jax.ShapeDtypeStruct((B, O), jnp.float32),
                   jax.ShapeDtypeStruct((B, T), jnp.float32)),
        grid=(T // chunk,),
        in_specs=[
            # xg is streamed over the sequence: auto double-buffered DMA overlaps
            # the next chunk's load with this chunk's recurrence.
            pl.BlockSpec((chunk, B, 4 * H), lambda t: (t, 0, 0)),
            # Weights / biases: full-array blocks, resident across the grid.
            pl.BlockSpec((H, 4 * H), lambda t: (0, 0)),
            pl.BlockSpec((H, T), lambda t: (0, 0)),
            pl.BlockSpec((1, T), lambda t: (0, 0)),
            pl.BlockSpec((H, O), lambda t: (0, 0)),
            pl.BlockSpec((1, O), lambda t: (0, 0)),
        ],
        out_specs=(
            pl.BlockSpec((B, O), lambda t: (0, 0)),
            pl.BlockSpec((B, T), lambda t: (0, 0)),
        ),
        scratch_shapes=[
            pltpu.VMEM((T, B, H), jnp.float32),   # all hidden states (for attention)
            pltpu.VMEM((B, H), jnp.float32),      # h carry across chunks
            pltpu.VMEM((B, H), jnp.float32),      # c carry across chunks
        ],
        compiler_params=pltpu.CompilerParams(
            dimension_semantics=("arbitrary",),   # carried state across the T axis
            vmem_limit_bytes=48 * 1024 * 1024,    # explicit budget (fits v7x 64 MiB)
        ),
    )(xg, whh_f, attw, attb, fcw, fcb)
    return scores, att


def reference_forward(input_x, params):
    """Pure-JAX reference mirroring the PyTorch module semantics (gate order i,f,g,o)."""
    B, D, T = input_x.shape
    H = params['w_hh'].shape[1]
    x = jnp.transpose(input_x, (2, 0, 1))                  # (T, B, D)
    h = jnp.zeros((B, H), jnp.float32)
    c = jnp.zeros((B, H), jnp.float32)
    outs = []
    for t in range(T):
        gates = (x[t] @ params['w_ih'].T + params['b_ih']
                 + h @ params['w_hh'].T + params['b_hh'])
        i = jax.nn.sigmoid(gates[:, 0 * H:1 * H])
        f = jax.nn.sigmoid(gates[:, 1 * H:2 * H])
        g = jnp.tanh(gates[:, 2 * H:3 * H])
        o = jax.nn.sigmoid(gates[:, 3 * H:4 * H])
        c = f * c + i * g
        h = o * jnp.tanh(c)
        outs.append(h)
    output = jnp.stack(outs)                               # (T, B, H)
    att = jax.nn.softmax(output[-1] @ params['att_w'].T + params['att_b'], axis=1)
    weighted = jnp.sum(output * att.T[:, :, None], axis=0)  # (B, H)
    scores = weighted @ params['fc_w'].T + params['fc_b']
    return scores, att


if __name__ == "__main__":
    # small shapes consistent with the module's forward
    B, D, H, O, T = 2, 16, 32, 10, 8   # batch, input_size, hidden_size, output_size, seq_len

    key = jax.random.PRNGKey(0)
    ks = jax.random.split(key, 9)
    bound = 1.0 / float(jnp.sqrt(H))

    def u(k, shape):
        return jax.random.uniform(k, shape, jnp.float32, -bound, bound)

    params = {
        'w_ih': u(ks[0], (4 * H, D)),
        'w_hh': u(ks[1], (4 * H, H)),
        'b_ih': u(ks[2], (4 * H,)),
        'b_hh': u(ks[3], (4 * H,)),
        'att_w': u(ks[4], (T, H)),
        'att_b': u(ks[5], (T,)),
        'fc_w': u(ks[6], (O, H)),
        'fc_b': u(ks[7], (O,)),
    }
    input_x = jax.random.normal(ks[8], (B, D, T), jnp.float32)

    scores, att = action_att_lstm_forward(input_x, params)
    jax.block_until_ready((scores, att))

    ref_scores, ref_att = reference_forward(input_x, params)
    assert scores.shape == (B, O) and att.shape == (B, T)
    assert jnp.allclose(scores, ref_scores, atol=2e-2, rtol=2e-2)
    assert jnp.allclose(att, ref_att, atol=2e-2, rtol=2e-2)

    print("KERNEL_OK")
</pallas_src>

<mosaic_0001>
module attributes {stable_mosaic.version = 11 : i64} {
  func.func @_lstm_att_kernel(%arg0: i32, %arg1: memref<4x2x128xf32, #tpu.memory_space<vmem>>, %arg2: memref<32x128xf32, #tpu.memory_space<vmem>>, %arg3: memref<32x8xf32, #tpu.memory_space<vmem>>, %arg4: memref<1x8xf32, #tpu.memory_space<vmem>>, %arg5: memref<32x10xf32, #tpu.memory_space<vmem>>, %arg6: memref<1x10xf32, #tpu.memory_space<vmem>>, %arg7: memref<2x10xf32, #tpu.memory_space<vmem>>, %arg8: memref<2x8xf32, #tpu.memory_space<vmem>>, %arg9: memref<8x2x32xf32, #tpu.memory_space<vmem>>, %arg10: memref<2x32xf32, #tpu.memory_space<vmem>>, %arg11: memref<2x32xf32, #tpu.memory_space<vmem>>) attributes {dimension_semantics = [#tpu.dimension_semantics<arbitrary>], iteration_bounds = array<i64: 2>, scalar_prefetch = 0 : i64, scratch_operands = 3 : i64, tpu.core_type = #tpu.core_type<tc>, window_params = [{transform_indices = @transform_0, window_bounds = array<i64: 4, 2, 128>}, {pipeline_mode = #tpu.pipeline_mode<synchronous>, transform_indices = @transform_1, window_bounds = array<i64: 32, 128>}, {pipeline_mode = #tpu.pipeline_mode<synchronous>, transform_indices = @transform_2, window_bounds = array<i64: 32, 8>}, {pipeline_mode = #tpu.pipeline_mode<synchronous>, transform_indices = @transform_3, window_bounds = array<i64: 1, 8>}, {pipeline_mode = #tpu.pipeline_mode<synchronous>, transform_indices = @transform_4, window_bounds = array<i64: 32, 10>}, {pipeline_mode = #tpu.pipeline_mode<synchronous>, transform_indices = @transform_5, window_bounds = array<i64: 1, 10>}, {pipeline_mode = #tpu.pipeline_mode<synchronous>, transform_indices = @transform_6, window_bounds = array<i64: 2, 10>}, {pipeline_mode = #tpu.pipeline_mode<synchronous>, transform_indices = @transform_7, window_bounds = array<i64: 2, 8>}]} {
    %c0_i32 = arith.constant 0 : i32
    %0 = arith.cmpi eq, %arg0, %c0_i32 : i32
    %1 = arith.extui %0 : i1 to i32
    %c0_i32_0 = arith.constant 0 : i32
    %2 = arith.cmpi ne, %1, %c0_i32_0 : i32
    scf.if %2 {
      %cst_41 = arith.constant 0.000000e+00 : f32
      %112 = vector.broadcast %cst_41 : f32 to vector<2x32xf32>
      %c0_42 = arith.constant 0 : index
      %c0_43 = arith.constant 0 : index
      %113 = vector.load %arg10[%c0_42, %c0_43] : memref<2x32xf32, #tpu.memory_space<vmem>>, vector<2x32xf32>
      tpu.vector_store %arg10[%c0_42, %c0_43], %112 {strides = array<i32>} : memref<2x32xf32, #tpu.memory_space<vmem>>, vector<2x32xf32>,
      %cst_44 = arith.constant 0.000000e+00 : f32
      %114 = vector.broadcast %cst_44 : f32 to vector<2x32xf32>
      %c0_45 = arith.constant 0 : index
      %c0_46 = arith.constant 0 : index
      %115 = vector.load %arg11[%c0_45, %c0_46] : memref<2x32xf32, #tpu.memory_space<vmem>>, vector<2x32xf32>
      tpu.vector_store %arg11[%c0_45, %c0_46], %114 {strides = array<i32>} : memref<2x32xf32, #tpu.memory_space<vmem>>, vector<2x32xf32>,
    } else {
    }
    %c0 = arith.constant 0 : index
    %c0_1 = arith.constant 0 : index
    %3 = vector.load %arg2[%c0, %c0_1] : memref<32x128xf32, #tpu.memory_space<vmem>>, vector<32x128xf32>
    %c4_i32 = arith.constant 4 : i32
    %4 = arith.muli %arg0, %c4_i32 : i32
    %c0_2 = arith.constant 0 : index
    %c0_3 = arith.constant 0 : index
    %5 = vector.load %arg10[%c0_2, %c0_3] : memref<2x32xf32, #tpu.memory_space<vmem>>, vector<2x32xf32>
    %c0_4 = arith.constant 0 : index
    %c0_5 = arith.constant 0 : index
    %6 = vector.load %arg11[%c0_4, %c0_5] : memref<2x32xf32, #tpu.memory_space<vmem>>, vector<2x32xf32>
    %c0_i32_6 = arith.constant 0 : i32
    %7 = arith.index_cast %c0_i32_6 : i32 to index
    %c0_7 = arith.constant 0 : index
    %c0_8 = arith.constant 0 : index
    %8 = vector.load %arg1[%7, %c0_7, %c0_8] : memref<4x2x128xf32, #tpu.memory_space<vmem>>, vector<1x2x128xf32>
    %9 = vector.shape_cast %8 : vector<1x2x128xf32> to vector<2x128xf32>
    %cst = arith.constant dense<0.000000e+00> : vector<2x128xf32>
    %10 = tpu.matmul %5, %3, %cst {dimension_numbers = #tpu.dot_dimension_numbers<[1], [0], [0], [1], [0, 0, 1, 1], [], []>} : vector<2x32xf32>, vector<32x128xf32>, vector<2x128xf32> -> vector<2x128xf32>
    %11 = arith.addf %9, %10 : vector<2x128xf32>
    %12 = math.tanh %11 : vector<2x128xf32>
    %13 = vector.extract_strided_slice %12 {offsets = [0, 0], sizes = [2, 96], strides = [1, 1]} : vector<2x128xf32> to vector<2x96xf32>
    %cst_9 = arith.constant 5.000000e-01 : f32
    %14 = vector.broadcast %cst_9 : f32 to vector<2x96xf32>
    %15 = arith.mulf %14, %13 : vector<2x96xf32>
    %cst_10 = arith.constant 5.000000e-01 : f32
    %16 = vector.broadcast %cst_10 : f32 to vector<2x96xf32>
    %17 = arith.addf %15, %16 : vector<2x96xf32>
    %18 = vector.extract_strided_slice %17 {offsets = [0, 0], sizes = [2, 32], strides = [1, 1]} : vector<2x96xf32> to vector<2x32xf32>
    %19 = vector.extract_strided_slice %17 {offsets = [0, 32], sizes = [2, 32], strides = [1, 1]} : vector<2x96xf32> to vector<2x32xf32>
    %20 = vector.extract_strided_slice %17 {offsets = [0, 64], sizes = [2, 32], strides = [1, 1]} : vector<2x96xf32> to vector<2x32xf32>
    %21 = vector.extract_strided_slice %12 {offsets = [0, 96], sizes = [2, 32], strides = [1, 1]} : vector<2x128xf32> to vector<2x32xf32>
    %22 = arith.mulf %19, %6 : vector<2x32xf32>
    %23 = arith.mulf %18, %21 : vector<2x32xf32>
    %24 = arith.addf %22, %23 : vector<2x32xf32>
    %25 = math.tanh %24 : vector<2x32xf32>
    %26 = arith.mulf %20, %25 : vector<2x32xf32>
    %27 = arith.addi %4, %c0_i32_6 : i32
    %28 = arith.index_cast %27 : i32 to index
    %c0_11 = arith.constant 0 : index
    %c0_12 = arith.constant 0 : index
    %29 = vector.load %arg9[%28, %c0_11, %c0_12] : memref<8x2x32xf32, #tpu.memory_space<vmem>>, vector<1x2x32xf32>
    %30 = vector.shape_cast %29 : vector<1x2x32xf32> to vector<2x32xf32>
    %31 = vector.shape_cast %26 : vector<2x32xf32> to vector<1x2x32xf32>
    tpu.vector_store %arg9[%28, %c0_11, %c0_12], %31 {strides = array<i32>} : memref<8x2x32xf32, #tpu.memory_space<vmem>>, vector<1x2x32xf32>,
    %c1_i32 = arith.constant 1 : i32
    %32 = arith.index_cast %c1_i32 : i32 to index
    %c0_13 = arith.constant 0 : index
    %c0_14 = arith.constant 0 : index
    %33 = vector.load %arg1[%32, %c0_13, %c0_14] : memref<4x2x128xf32, #tpu.memory_space<vmem>>, vector<1x2x128xf32>
    %34 = vector.shape_cast %33 : vector<1x2x128xf32> to vector<2x128xf32>
    %cst_15 = arith.constant dense<0.000000e+00> : vector<2x128xf32>
    %35 = tpu.matmul %26, %3, %cst_15 {dimension_numbers = #tpu.dot_dimension_numbers<[1], [0], [0], [1], [0, 0, 1, 1], [], []>} : vector<2x32xf32>, vector<32x128xf32>, vector<2x128xf32> -> vector<2x128xf32>
    %36 = arith.addf %34, %35 : vector<2x128xf32>
    %37 = math.tanh %36 : vector<2x128xf32>
    %38 = vector.extract_strided_slice %37 {offsets = [0, 0], sizes = [2, 96], strides = [1, 1]} : vector<2x128xf32> to vector<2x96xf32>
    %cst_16 = arith.constant 5.000000e-01 : f32
    %39 = vector.broadcast %cst_16 : f32 to vector<2x96xf32>
    %40 = arith.mulf %39, %38 : vector<2x96xf32>
    %cst_17 = arith.constant 5.000000e-01 : f32
    %41 = vector.broadcast %cst_17 : f32 to vector<2x96xf32>
    %42 = arith.addf %40, %41 : vector<2x96xf32>
    %43 = vector.extract_strided_slice %42 {offsets = [0, 0], sizes = [2, 32], strides = [1, 1]} : vector<2x96xf32> to vector<2x32xf32>
    %44 = vector.extract_strided_slice %42 {offsets = [0, 32], sizes = [2, 32], strides = [1, 1]} : vector<2x96xf32> to vector<2x32xf32>
    %45 = vector.extract_strided_slice %42 {offsets = [0, 64], sizes = [2, 32], strides = [1, 1]} : vector<2x96xf32> to vector<2x32xf32>
    %46 = vector.extract_strided_slice %37 {offsets = [0, 96], sizes = [2, 32], strides = [1, 1]} : vector<2x128xf32> to vector<2x32xf32>
    %47 = arith.mulf %44, %24 : vector<2x32xf32>
    %48 = arith.mulf %43, %46 : vector<2x32xf32>
    %49 = arith.addf %47, %48 : vector<2x32xf32>
    %50 = math.tanh %49 : vector<2x32xf32>
    %51 = arith.mulf %45, %50 : vector<2x32xf32>
    %52 = arith.addi %4, %c1_i32 : i32
    %53 = arith.index_cast %52 : i32 to index
    %c0_18 = arith.constant 0 : index
    %c0_19 = arith.constant 0 : index
    %54 = vector.load %arg9[%53, %c0_18, %c0_19] : memref<8x2x32xf32, #tpu.memory_space<vmem>>, vector<1x2x32xf32>
    %55 = vector.shape_cast %54 : vector<1x2x32xf32> to vector<2x32xf32>
    %56 = vector.shape_cast %51 : vector<2x32xf32> to vector<1x2x32xf32>
    tpu.vector_store %arg9[%53, %c0_18, %c0_19], %56 {strides = array<i32>} : memref<8x2x32xf32, #tpu.memory_space<vmem>>, vector<1x2x32xf32>,
    %c2_i32 = arith.constant 2 : i32
    %57 = arith.index_cast %c2_i32 : i32 to index
    %c0_20 = arith.constant 0 : index
    %c0_21 = arith.constant 0 : index
    %58 = vector.load %arg1[%57, %c0_20, %c0_21] : memref<4x2x128xf32, #tpu.memory_space<vmem>>, vector<1x2x128xf32>
    %59 = vector.shape_cast %58 : vector<1x2x128xf32> to vector<2x128xf32>
    %cst_22 = arith.constant dense<0.000000e+00> : vector<2x128xf32>
    %60 = tpu.matmul %51, %3, %cst_22 {dimension_numbers = #tpu.dot_dimension_numbers<[1], [0], [0], [1], [0, 0, 1, 1], [], []>} : vector<2x32xf32>, vector<32x128xf32>, vector<2x128xf32> -> vector<2x128xf32>
    %61 = arith.addf %59, %60 : vector<2x128xf32>
    %62 = math.tanh %61 : vector<2x128xf32>
    %63 = vector.extract_strided_slice %62 {offsets = [0, 0], sizes = [2, 96], strides = [1, 1]} : vector<2x128xf32> to vector<2x96xf32>
    %cst_23 = arith.constant 5.000000e-01 : f32
    %64 = vector.broadcast %cst_23 : f32 to vector<2x96xf32>
    %65 = arith.mulf %64, %63 : vector<2x96xf32>
    %cst_24 = arith.constant 5.000000e-01 : f32
    %66 = vector.broadcast %cst_24 : f32 to vector<2x96xf32>
    %67 = arith.addf %65, %66 : vector<2x96xf32>
    %68 = vector.extract_strided_slice %67 {offsets = [0, 0], sizes = [2, 32], strides = [1, 1]} : vector<2x96xf32> to vector<2x32xf32>
    %69 = vector.extract_strided_slice %67 {offsets = [0, 32], sizes = [2, 32], strides = [1, 1]} : vector<2x96xf32> to vector<2x32xf32>
    %70 = vector.extract_strided_slice %67 {offsets = [0, 64], sizes = [2, 32], strides = [1, 1]} : vector<2x96xf32> to vector<2x32xf32>
    %71 = vector.extract_strided_slice %62 {offsets = [0, 96], sizes = [2, 32], strides = [1, 1]} : vector<2x128xf32> to vector<2x32xf32>
    %72 = arith.mulf %69, %49 : vector<2x32xf32>
    %73 = arith.mulf %68, %71 : vector<2x32xf32>
    %74 = arith.addf %72, %73 : vector<2x32xf32>
    %75 = math.tanh %74 : vector<2x32xf32>
    %76 = arith.mulf %70, %75 : vector<2x32xf32>
    %77 = arith.addi %4, %c2_i32 : i32
    %78 = arith.index_cast %77 : i32 to index
    %c0_25 = arith.constant 0 : index
    %c0_26 = arith.constant 0 : index
    %79 = vector.load %arg9[%78, %c0_25, %c0_26] : memref<8x2x32xf32, #tpu.memory_space<vmem>>, vector<1x2x32xf32>
    %80 = vector.shape_cast %79 : vector<1x2x32xf32> to vector<2x32xf32>
    %81 = vector.shape_cast %76 : vector<2x32xf32> to vector<1x2x32xf32>
    tpu.vector_store %arg9[%78, %c0_25, %c0_26], %81 {strides = array<i32>} : memref<8x2x32xf32, #tpu.memory_space<vmem>>, vector<1x2x32xf32>,
    %c3_i32 = arith.constant 3 : i32
    %82 = arith.index_cast %c3_i32 : i32 to index
    %c0_27 = arith.constant 0 : index
    %c0_28 = arith.constant 0 : index
    %83 = vector.load %arg1[%82, %c0_27, %c0_28] : memref<4x2x128xf32, #tpu.memory_space<vmem>>, vector<1x2x128xf32>
    %84 = vector.shape_cast %83 : vector<1x2x128xf32> to vector<2x128xf32>
    %cst_29 = arith.constant dense<0.000000e+00> : vector<2x128xf32>
    %85 = tpu.matmul %76, %3, %cst_29 {dimension_numbers = #tpu.dot_dimension_numbers<[1], [0], [0], [1], [0, 0, 1, 1], [], []>} : vector<2x32xf32>, vector<32x128xf32>, vector<2x128xf32> -> vector<2x128xf32>
    %86 = arith.addf %84, %85 : vector<2x128xf32>
    %87 = math.tanh %86 : vector<2x128xf32>
    %88 = vector.extract_strided_slice %87 {offsets = [0, 0], sizes = [2, 96], strides = [1, 1]} : vector<2x128xf32> to vector<2x96xf32>
    %cst_30 = arith.constant 5.000000e-01 : f32
    %89 = vector.broadcast %cst_30 : f32 to vector<2x96xf32>
    %90 = arith.mulf %89, %88 : vector<2x96xf32>
    %cst_31 = arith.constant 5.000000e-01 : f32
    %91 = vector.broadcast %cst_31 : f32 to vector<2x96xf32>
    %92 = arith.addf %90, %91 : vector<2x96xf32>
    %93 = vector.extract_strided_slice %92 {offsets = [0, 0], sizes = [2, 32], strides = [1, 1]} : vector<2x96xf32> to vector<2x32xf32>
    %94 = vector.extract_strided_slice %92 {offsets = [0, 32], sizes = [2, 32], strides = [1, 1]} : vector<2x96xf32> to vector<2x32xf32>
    %95 = vector.extract_strided_slice %92 {offsets = [0, 64], sizes = [2, 32], strides = [1, 1]} : vector<2x96xf32> to vector<2x32xf32>
    %96 = vector.extract_strided_slice %87 {offsets = [0, 96], sizes = [2, 32], strides = [1, 1]} : vector<2x128xf32> to vector<2x32xf32>
    %97 = arith.mulf %94, %74 : vector<2x32xf32>
    %98 = arith.mulf %93, %96 : vector<2x32xf32>
    %99 = arith.addf %97, %98 : vector<2x32xf32>
    %100 = math.tanh %99 : vector<2x32xf32>
    %101 = arith.mulf %95, %100 : vector<2x32xf32>
    %102 = arith.addi %4, %c3_i32 : i32
    %103 = arith.index_cast %102 : i32 to index
    %c0_32 = arith.constant 0 : index
    %c0_33 = arith.constant 0 : index
    %104 = vector.load %arg9[%103, %c0_32, %c0_33] : memref<8x2x32xf32, #tpu.memory_space<vmem>>, vector<1x2x32xf32>
    %105 = vector.shape_cast %104 : vector<1x2x32xf32> to vector<2x32xf32>
    %106 = vector.shape_cast %101 : vector<2x32xf32> to vector<1x2x32xf32>
    tpu.vector_store %arg9[%103, %c0_32, %c0_33], %106 {strides = array<i32>} : memref<8x2x32xf32, #tpu.memory_space<vmem>>, vector<1x2x32xf32>,
    %c4_i32_34 = arith.constant 4 : i32
    %c0_35 = arith.constant 0 : index
    %c0_36 = arith.constant 0 : index
    %107 = vector.load %arg10[%c0_35, %c0_36] : memref<2x32xf32, #tpu.memory_space<vmem>>, vector<2x32xf32>
    tpu.vector_store %arg10[%c0_35, %c0_36], %101 {strides = array<i32>} : memref<2x32xf32, #tpu.memory_space<vmem>>, vector<2x32xf32>,
    %c0_37 = arith.constant 0 : index
    %c0_38 = arith.constant 0 : index
    %108 = vector.load %arg11[%c0_37, %c0_38] : memref<2x32xf32, #tpu.memory_space<vmem>>, vector<2x32xf32>
    tpu.vector_store %arg11[%c0_37, %c0_38], %99 {strides = array<i32>} : memref<2x32xf32, #tpu.memory_space<vmem>>, vector<2x32xf32>,
    %c1_i32_39 = arith.constant 1 : i32
    %109 = arith.cmpi eq, %arg0, %c1_i32_39 : i32
    %110 = arith.extui %109 : i1 to i32
    %c0_i32_40 = arith.constant 0 : i32
    %111 = arith.cmpi ne, %110, %c0_i32_40 : i32
    scf.if %111 {
      %c0_41 = arith.constant 0 : index
      %c0_42 = arith.constant 0 : index
      %112 = vector.load %arg3[%c0_41, %c0_42] : memref<32x8xf32, #tpu.memory_space<vmem>>, vector<32x8xf32>
      %cst_43 = arith.constant dense<0.000000e+00> : vector<2x8xf32>
      %113 = tpu.matmul %101, %112, %cst_43 {dimension_numbers = #tpu.dot_dimension_numbers<[1], [0], [0], [1], [0, 0, 1, 1], [], []>} : vector<2x32xf32>, vector<32x8xf32>, vector<2x8xf32> -> vector<2x8xf32>
      %c0_44 = arith.constant 0 : index
      %c0_45 = arith.constant 0 : index
      %114 = vector.load %arg4[%c0_44, %c0_45] : memref<1x8xf32, #tpu.memory_space<vmem>>, vector<1x8xf32>
      %115 = vector.broadcast %114 : vector<1x8xf32> to vector<2x8xf32>
      %116 = arith.addf %113, %115 : vector<2x8xf32>
      %cst_46 = arith.constant dense<0xFF800000> : vector<2xf32>
      %117 = vector.multi_reduction <maximumf>, %116, %cst_46 [1] : vector<2x8xf32> to vector<2xf32>
      %118 = vector.shape_cast %117 : vector<2xf32> to vector<2x1xf32>
      %119 = vector.broadcast %118 : vector<2x1xf32> to vector<2x8xf32>
      %120 = arith.subf %116, %119 : vector<2x8xf32>
      %121 = math.exp %120 : vector<2x8xf32>
      %cst_47 = arith.constant dense<0.000000e+00> : vector<2xf32>
      %122 = vector.multi_reduction <add>, %121, %cst_47 [1] : vector<2x8xf32> to vector<2xf32>
      %123 = vector.shape_cast %122 : vector<2xf32> to vector<2x1xf32>
      %124 = vector.broadcast %123 : vector<2x1xf32> to vector<2x8xf32>
      %125 = arith.divf %121, %124 : vector<2x8xf32>
      %c0_48 = arith.constant 0 : index
      %c0_49 = arith.constant 0 : index
      %126 = vector.load %arg8[%c0_48, %c0_49] : memref<2x8xf32, #tpu.memory_space<vmem>>, vector<2x8xf32>
      tpu.vector_store %arg8[%c0_48, %c0_49], %125 {strides = array<i32>} : memref<2x8xf32, #tpu.memory_space<vmem>>, vector<2x8xf32>,
      %c0_50 = arith.constant 0 : index
      %c0_51 = arith.constant 0 : index
      %c0_52 = arith.constant 0 : index
      %127 = vector.load %arg9[%c0_50, %c0_51, %c0_52] : memref<8x2x32xf32, #tpu.memory_space<vmem>>, vector<1x2x32xf32>
      %128 = vector.shape_cast %127 : vector<1x2x32xf32> to vector<2x32xf32>
      %129 = vector.extract_strided_slice %125 {offsets = [0, 0], sizes = [2, 1], strides = [1, 1]} : vector<2x8xf32> to vector<2x1xf32>
      %130 = vector.broadcast %129 : vector<2x1xf32> to vector<2x32xf32>
      %131 = arith.mulf %128, %130 : vector<2x32xf32>
      %c1 = arith.constant 1 : index
      %c0_53 = arith.constant 0 : index
      %c0_54 = arith.constant 0 : index
      %132 = vector.load %arg9[%c1, %c0_53, %c0_54] : memref<8x2x32xf32, #tpu.memory_space<vmem>>, vector<1x2x32xf32>
      %133 = vector.shape_cast %132 : vector<1x2x32xf32> to vector<2x32xf32>
      %134 = vector.extract_strided_slice %125 {offsets = [0, 1], sizes = [2, 1], strides = [1, 1]} : vector<2x8xf32> to vector<2x1xf32>
      %135 = vector.broadcast %134 : vector<2x1xf32> to vector<2x32xf32>
      %136 = arith.mulf %133, %135 : vector<2x32xf32>
      %137 = arith.addf %131, %136 : vector<2x32xf32>
      %c2 = arith.constant 2 : index
      %c0_55 = arith.constant 0 : index
      %c0_56 = arith.constant 0 : index
      %138 = vector.load %arg9[%c2, %c0_55, %c0_56] : memref<8x2x32xf32, #tpu.memory_space<vmem>>, vector<1x2x32xf32>
      %139 = vector.shape_cast %138 : vector<1x2x32xf32> to vector<2x32xf32>
      %140 = vector.extract_strided_slice %125 {offsets = [0, 2], sizes = [2, 1], strides = [1, 1]} : vector<2x8xf32> to vector<2x1xf32>
      %141 = vector.broadcast %140 : vector<2x1xf32> to vector<2x32xf32>
      %142 = arith.mulf %139, %141 : vector<2x32xf32>
      %143 = arith.addf %137, %142 : vector<2x32xf32>
      %c3 = arith.constant 3 : index
      %c0_57 = arith.constant 0 : index
      %c0_58 = arith.constant 0 : index
      %144 = vector.load %arg9[%c3, %c0_57, %c0_58] : memref<8x2x32xf32, #tpu.memory_space<vmem>>, vector<1x2x32xf32>
      %145 = vector.shape_cast %144 : vector<1x2x32xf32> to vector<2x32xf32>
      %146 = vector.extract_strided_slice %125 {offsets = [0, 3], sizes = [2, 1], strides = [1, 1]} : vector<2x8xf32> to vector<2x1xf32>
      %147 = vector.broadcast %146 : vector<2x1xf32> to vector<2x32xf32>
      %148 = arith.mulf %145, %147 : vector<2x32xf32>
      %149 = arith.addf %143, %148 : vector<2x32xf32>
      %c4 = arith.constant 4 : index
      %c0_59 = arith.constant 0 : index
      %c0_60 = arith.constant 0 : index
      %150 = vector.load %arg9[%c4, %c0_59, %c0_60] : memref<8x2x32xf32, #tpu.memory_space<vmem>>, vector<1x2x32xf32>
      %151 = vector.shape_cast %150 : vector<1x2x32xf32> to vector<2x32xf32>
      %152 = vector.extract_strided_slice %125 {offsets = [0, 4], sizes = [2, 1], strides = [1, 1]} : vector<2x8xf32> to vector<2x1xf32>
      %153 = vector.broadcast %152 : vector<2x1xf32> to vector<2x32xf32>
      %154 = arith.mulf %151, %153 : vector<2x32xf32>
      %155 = arith.addf %149, %154 : vector<2x32xf32>
      %c5 = arith.constant 5 : index
      %c0_61 = arith.constant 0 : index
      %c0_62 = arith.constant 0 : index
      %156 = vector.load %arg9[%c5, %c0_61, %c0_62] : memref<8x2x32xf32, #tpu.memory_space<vmem>>, vector<1x2x32xf32>
      %157 = vector.shape_cast %156 : vector<1x2x32xf32> to vector<2x32xf32>
      %158 = vector.extract_strided_slice %125 {offsets = [0, 5], sizes = [2, 1], strides = [1, 1]} : vector<2x8xf32> to vector<2x1xf32>
      %159 = vector.broadcast %158 : vector<2x1xf32> to vector<2x32xf32>
      %160 = arith.mulf %157, %159 : vector<2x32xf32>
      %161 = arith.addf %155, %160 : vector<2x32xf32>
      %c6 = arith.constant 6 : index
      %c0_63 = arith.constant 0 : index
      %c0_64 = arith.constant 0 : index
      %162 = vector.load %arg9[%c6, %c0_63, %c0_64] : memref<8x2x32xf32, #tpu.memory_space<vmem>>, vector<1x2x32xf32>
      %163 = vector.shape_cast %162 : vector<1x2x32xf32> to vector<2x32xf32>
      %164 = vector.extract_strided_slice %125 {offsets = [0, 6], sizes = [2, 1], strides = [1, 1]} : vector<2x8xf32> to vector<2x1xf32>
      %165 = vector.broadcast %164 : vector<2x1xf32> to vector<2x32xf32>
      %166 = arith.mulf %163, %165 : vector<2x32xf32>
      %167 = arith.addf %161, %166 : vector<2x32xf32>
      %c7 = arith.constant 7 : index
      %c0_65 = arith.constant 0 : index
      %c0_66 = arith.constant 0 : index
      %168 = vector.load %arg9[%c7, %c0_65, %c0_66] : memref<8x2x32xf32, #tpu.memory_space<vmem>>, vector<1x2x32xf32>
      %169 = vector.shape_cast %168 : vector<1x2x32xf32> to vector<2x32xf32>
      %170 = vector.extract_strided_slice %125 {offsets = [0, 7], sizes = [2, 1], strides = [1, 1]} : vector<2x8xf32> to vector<2x1xf32>
      %171 = vector.broadcast %170 : vector<2x1xf32> to vector<2x32xf32>
      %172 = arith.mulf %169, %171 : vector<2x32xf32>
      %173 = arith.addf %167, %172 : vector<2x32xf32>
      %c0_67 = arith.constant 0 : index
      %c0_68 = arith.constant 0 : index
      %174 = vector.load %arg5[%c0_67, %c0_68] : memref<32x10xf32, #tpu.memory_space<vmem>>, vector<32x10xf32>
      %cst_69 = arith.constant dense<0.000000e+00> : vector<2x10xf32>
      %175 = tpu.matmul %173, %174, %cst_69 {dimension_numbers = #tpu.dot_dimension_numbers<[1], [0], [0], [1], [0, 0, 1, 1], [], []>} : vector<2x32xf32>, vector<32x10xf32>, vector<2x10xf32> -> vector<2x10xf32>
      %c0_70 = arith.constant 0 : index
      %c0_71 = arith.constant 0 : index
      %176 = vector.load %arg6[%c0_70, %c0_71] : memref<1x10xf32, #tpu.memory_space<vmem>>, vector<1x10xf32>
      %177 = vector.broadcast %176 : vector<1x10xf32> to vector<2x10xf32>
      %178 = arith.addf %175, %177 : vector<2x10xf32>
      %c0_72 = arith.constant 0 : index
      %c0_73 = arith.constant 0 : index
      %179 = vector.load %arg7[%c0_72, %c0_73] : memref<2x10xf32, #tpu.memory_space<vmem>>, vector<2x10xf32>
      tpu.vector_store %arg7[%c0_72, %c0_73], %178 {strides = array<i32>} : memref<2x10xf32, #tpu.memory_space<vmem>>, vector<2x10xf32>,
    } else {
    }
    return
  }
  func.func @transform_0(%arg0: i32) -> (i32, i32, i32) {
    %c0_i32 = arith.constant 0 : i32
    %c0_i32_0 = arith.constant 0 : i32
    %c0_i32_1 = arith.constant 0 : i32
    return %arg0, %c0_i32, %c0_i32_0 : i32, i32, i32
  }
  func.func @transform_1(%arg0: i32) -> (i32, i32) {
    %c0_i32 = arith.constant 0 : i32
    %c0_i32_0 = arith.constant 0 : i32
    %c0_i32_1 = arith.constant 0 : i32
    return %c0_i32, %c0_i32_0 : i32, i32
  }
  func.func @transform_2(%arg0: i32) -> (i32, i32) {
    %c0_i32 = arith.constant 0 : i32
    %c0_i32_0 = arith.constant 0 : i32
    %c0_i32_1 = arith.constant 0 : i32
    return %c0_i32, %c0_i32_0 : i32, i32
  }
  func.func @transform_3(%arg0: i32) -> (i32, i32) {
    %c0_i32 = arith.constant 0 : i32
    %c0_i32_0 = arith.constant 0 : i32
    %c0_i32_1 = arith.constant 0 : i32
    return %c0_i32, %c0_i32_0 : i32, i32
  }
  func.func @transform_4(%arg0: i32) -> (i32, i32) {
    %c0_i32 = arith.constant 0 : i32
    %c0_i32_0 = arith.constant 0 : i32
    %c0_i32_1 = arith.constant 0 : i32
    return %c0_i32, %c0_i32_0 : i32, i32
  }
  func.func @transform_5(%arg0: i32) -> (i32, i32) {
    %c0_i32 = arith.constant 0 : i32
    %c0_i32_0 = arith.constant 0 : i32
    %c0_i32_1 = arith.constant 0 : i32
    return %c0_i32, %c0_i32_0 : i32, i32
  }
  func.func @transform_6(%arg0: i32) -> (i32, i32) {
    %c0_i32 = arith.constant 0 : i32
    %c0_i32_0 = arith.constant 0 : i32
    %c0_i32_1 = arith.constant 0 : i32
    return %c0_i32, %c0_i32_0 : i32, i32
  }
  func.func @transform_7(%arg0: i32) -> (i32, i32) {
    %c0_i32 = arith.constant 0 : i32
    %c0_i32_0 = arith.constant 0 : i32
    %c0_i32_1 = arith.constant 0 : i32
    return %c0_i32, %c0_i32_0 : i32, i32
  }
}

</mosaic_0001>

<llo_original>
// kernel: tpu_custom_call.1
$region0: #{tpu_custom_call.1}
  #allocation0 [shape = 'u32[]', space=smem, size = 0x4, offset = 0x4, fixed_abs, tag = 'smem constant byte address 0x4 - core index']
  #allocation1 [shape = 'u32[72,128]{1,0:T(1,128)}', space=vmem, size = 0x9000, scoped, tag = 'internal scratch']
  #allocation2 [shape = 'f32[8,2,32]{2,1,0:T(2,128)}', space=vmem, size = 0x2000, scoped, tag = 'scratch operand']
  #allocation3 [shape = 'f32[2,32]{1,0:T(2,128)}', space=vmem, size = 0x400, scoped, tag = 'scratch operand']
  #allocation4 [shape = 'f32[2,32]{1,0:T(2,128)}', space=vmem, size = 0x400, scoped, tag = 'scratch operand']
  %s0 = inlined_call_operand.vmem [shape: f32[8,2,128], index: 0, kind: input, shape index: {}]
  %s1 = inlined_call_operand.vmem [shape: f32[32,128], index: 1, kind: input, shape index: {}]
  %s2 = inlined_call_operand.vmem [shape: f32[32,8], index: 2, kind: input, shape index: {}]
  %s3 = inlined_call_operand.vmem [shape: f32[1,8], index: 3, kind: input, shape index: {}]
  %s4 = inlined_call_operand.vmem [shape: f32[32,10], index: 4, kind: input, shape index: {}]
  %s5 = inlined_call_operand.vmem [shape: f32[1,10], index: 5, kind: input, shape index: {}]
  %s6 = inlined_call_operand.hbm [shape: f32[2,10], index: 6, kind: output, shape index: {0}]
  %s7 = inlined_call_operand.hbm [shape: f32[2,8], index: 7, kind: output, shape index: {1}]
  %8 = xla_tuple %s6, %s7
  %s9 = sld [smem:[#allocation0]]
  $region73: #{tpu_custom_call.1} parent=0
    _
  %s11 = ssub.s32 1, %s9
  %s12 = scalar_select 0, %s11, %s9
  $region1: #{tpu_custom_call.1} parent=0
    #allocation5 [shape = 'u8[1024]{0}', space=vmem, size = 0x400, scoped, tag = 'output window, operand 0, single buffered']
    #allocation6 [shape = 's32[2]{0}', space=sflag, size = 0x8, scoped, tag = 'scoped memory for tpu_custom_call.1']
    #allocation7 [shape = 'u8[1024]{0}', space=vmem, size = 0x400, scoped, tag = 'output window, operand 1, single buffered']
    #allocation8 [shape = 's32[1]{0}', space=sflag, size = 0x4, scoped, tag = 'scoped memory for tpu_custom_call.1']
    %13 = vsyncpa [#allocation6], 0
    %14 = vsyncpa [#allocation8], 0
    loop: start=0, step=1, limit=4
    $region2: #{tpu_custom_call.1} parent=1 // loop_pre_header
      _
    $region3: #{tpu_custom_call.1} parent=1 // loop_header
      %s16 = sphi 0, %s20
      %p17 = scmp.ge.s32.totalorder %s16, 4
      %s26 = sphi 0, %s28
      %s29 = sphi 0, %s26
      %s30 = sphi 0, %s29
      %s46 = sphi 0, %s30
      %s50 = sphi 0, %s50
      %s52 = sphi 0, %s50
      %s53 = sphi 0, %s52
      %s67 = sphi 0, %s53
      %s71 = sphi 0, %s71
      %s73 = sphi 0, %s71
      %s74 = sphi 0, %s73
      %s88 = sphi 0, %s74
      %s92 = sphi 0, %s92
      %s94 = sphi 0, %s92
      %s95 = sphi 0, %s94
      %s109 = sphi 0, %s95
      %s113 = sphi 0, %s113
      %s115 = sphi 0, %s113
      %s116 = sphi 0, %s115
      %s130 = sphi 0, %s116
      %s134 = sphi 0, %s134
      %s136 = sphi 0, %s134
      %s137 = sphi 0, %s136
      %s151 = sphi 0, %s137
      %s155 = sphi 0, %s155
      %s157 = sphi 0, %s155
      %s158 = sphi 0, %s157
      %s172 = sphi 0, %s158
      %s176 = sphi 0, %s176
      %s178 = sphi 0, %s176
      %s179 = sphi 0, %s178
      %s193 = sphi 0, %s179
    $region4: #{tpu_custom_call.1} parent=1 // loop_header_branch
      %19 = sbr.rel (%p17) target = $region8
    $region5: #{tpu_custom_call.1} parent=1 // loop_body
      %s21 = ssub.s32 %s16, 1
      %s22 = ssub.s32 %s16, 2
      %s23 = sadd.s32 %s16, 1
      %s24 = ssub.s32 %s16, %s23
      %p25 = scmp.eq.s32.totalorder %s24, 0
      %s27 = sadd.s32 %s26, 1
      %s28 = scalar_select %p25, %s26, %s27
      %p31 = pneg %p25
      %p32 = scmp.eq.s32.totalorder %s16, 1
      %p33 = por %p31, %p32
      %p34 = scmp.ne.s32.totalorder %s26, %s29
      %p35 = scmp.eq.s32.totalorder %s16, 0
      %p36 = por %p34, %p35
      %p37 = scmp.ne.s32.totalorder %s26, %s29
      %p38 = scmp.eq.s32.totalorder %s21, 1
      %p39 = por %p37, %p38
      %p40 = scmp.ne.s32.totalorder %s29, %s30
      %p41 = scmp.eq.s32.totalorder %s21, 0
      %p42 = por %p40, %p41
      %p43 = scmp.ne.s32.totalorder %s29, %s30
      %p44 = scmp.eq.s32.totalorder %s22, 1
      %p45 = por %p43, %p44
      %p47 = scmp.ne.s32.totalorder %s30, %s46
      %p48 = scmp.eq.s32.totalorder %s22, 0
      %p49 = por %p47, %p48
      %s51 = sadd.s32 %s50, 1
      %p54 = scmp.eq.s32.totalorder %s16, 1
      %p55 = scmp.ne.s32.totalorder %s50, %s52
      %p56 = scmp.eq.s32.totalorder %s16, 0
      %p57 = por %p55, %p56
      %p58 = scmp.ne.s32.totalorder %s50, %s52
      %p59 = scmp.eq.s32.totalorder %s21, 1
      %p60 = por %p58, %p59
      %p61 = scmp.ne.s32.totalorder %s52, %s53
      %p62 = scmp.eq.s32.totalorder %s21, 0
      %p63 = por %p61, %p62
      %p64 = scmp.ne.s32.totalorder %s52, %s53
      %p65 = scmp.eq.s32.totalorder %s22, 1
      %p66 = por %p64, %p65
      %p68 = scmp.ne.s32.totalorder %s53, %s67
      %p69 = scmp.eq.s32.totalorder %s22, 0
      %p70 = por %p68, %p69
      %s72 = sadd.s32 %s71, 1
      %p75 = scmp.eq.s32.totalorder %s16, 1
      %p76 = scmp.ne.s32.totalorder %s71, %s73
      %p77 = scmp.eq.s32.totalorder %s16, 0
      %p78 = por %p76, %p77
      %p79 = scmp.ne.s32.totalorder %s71, %s73
      %p80 = scmp.eq.s32.totalorder %s21, 1
      %p81 = por %p79, %p80
      %p82 = scmp.ne.s32.totalorder %s73, %s74
      %p83 = scmp.eq.s32.totalorder %s21, 0
      %p84 = por %p82, %p83
      %p85 = scmp.ne.s32.totalorder %s73, %s74
      %p86 = scmp.eq.s32.totalorder %s22, 1
      %p87 = por %p85, %p86
      %p89 = scmp.ne.s32.totalorder %s74, %s88
      %p90 = scmp.eq.s32.totalorder %s22, 0
      %p91 = por %p89, %p90
      %s93 = sadd.s32 %s92, 1
      %p96 = scmp.eq.s32.totalorder %s16, 1
      %p97 = scmp.ne.s32.totalorder %s92, %s94
      %p98 = scmp.eq.s32.totalorder %s16, 0
      %p99 = por %p97, %p98
      %p100 = scmp.ne.s32.totalorder %s92, %s94
      %p101 = scmp.eq.s32.totalorder %s21, 1
      %p102 = por %p100, %p101
      %p103 = scmp.ne.s32.totalorder %s94, %s95
      %p104 = scmp.eq.s32.totalorder %s21, 0
      %p105 = por %p103, %p104
      %p106 = scmp.ne.s32.totalorder %s94, %s95
      %p107 = scmp.eq.s32.totalorder %s22, 1
      %p108 = por %p106, %p107
      %p110 = scmp.ne.s32.totalorder %s95, %s109
      %p111 = scmp.eq.s32.totalorder %s22, 0
      %p112 = por %p110, %p111
      %s114 = sadd.s32 %s113, 1
      %p117 = scmp.eq.s32.totalorder %s16, 1
      %p118 = scmp.ne.s32.totalorder %s113, %s115
      %p119 = scmp.eq.s32.totalorder %s16, 0
      %p120 = por %p118, %p119
      %p121 = scmp.ne.s32.totalorder %s113, %s115
      %p122 = scmp.eq.s32.totalorder %s21, 1
      %p123 = por %p121, %p122
      %p124 = scmp.ne.s32.totalorder %s115, %s116
      %p125 = scmp.eq.s32.totalorder %s21, 0
      %p126 = por %p124, %p125
      %p127 = scmp.ne.s32.totalorder %s115, %s116
      %p128 = scmp.eq.s32.totalorder %s22, 1
      %p129 = por %p127, %p128
      %p131 = scmp.ne.s32.totalorder %s116, %s130
      %p132 = scmp.eq.s32.totalorder %s22, 0
      %p133 = por %p131, %p132
      %s135 = sadd.s32 %s134, 1
      %p138 = scmp.eq.s32.totalorder %s16, 1
      %p139 = scmp.ne.s32.totalorder %s134, %s136
      %p140 = scmp.eq.s32.totalorder %s16, 0
      %p141 = por %p139, %p140
      %p142 = scmp.ne.s32.totalorder %s134, %s136
      %p143 = scmp.eq.s32.totalorder %s21, 1
      %p144 = por %p142, %p143
      %p145 = scmp.ne.s32.totalorder %s136, %s137
      %p146 = scmp.eq.s32.totalorder %s21, 0
      %p147 = por %p145, %p146
      %p148 = scmp.ne.s32.totalorder %s136, %s137
      %p149 = scmp.eq.s32.totalorder %s22, 1
      %p150 = por %p148, %p149
      %p152 = scmp.ne.s32.totalorder %s137, %s151
      %p153 = scmp.eq.s32.totalorder %s22, 0
      %p154 = por %p152, %p153
      %s156 = sadd.s32 %s155, 1
      %p159 = scmp.eq.s32.totalorder %s16, 1
      %p160 = scmp.ne.s32.totalorder %s155, %s157
      %p161 = scmp.eq.s32.totalorder %s16, 0
      %p162 = por %p160, %p161
      %p163 = scmp.ne.s32.totalorder %s155, %s157
      %p164 = scmp.eq.s32.totalorder %s21, 1
      %p165 = por %p163, %p164
      %p166 = scmp.ne.s32.totalorder %s157, %s158
      %p167 = scmp.eq.s32.totalorder %s21, 0
      %p168 = por %p166, %p167
      %p169 = scmp.ne.s32.totalorder %s157, %s158
      %p170 = scmp.eq.s32.totalorder %s22, 1
      %p171 = por %p169, %p170
      %p173 = scmp.ne.s32.totalorder %s158, %s172
      %p174 = scmp.eq.s32.totalorder %s22, 0
      %p175 = por %p173, %p174
      %s177 = sadd.s32 %s176, 1
      %p180 = scmp.eq.s32.totalorder %s16, 1
      %p181 = scmp.ne.s32.totalorder %s176, %s178
      %p182 = scmp.eq.s32.totalorder %s16, 0
      %p183 = por %p181, %p182
      %p184 = scmp.ne.s32.totalorder %s176, %s178
      %p185 = scmp.eq.s32.totalorder %s21, 1
      %p186 = por %p184, %p185
      %p187 = scmp.ne.s32.totalorder %s178, %s179
      %p188 = scmp.eq.s32.totalorder %s21, 0
      %p189 = por %p187, %p188
      %p190 = scmp.ne.s32.totalorder %s178, %s179
      %p191 = scmp.eq.s32.totalorder %s22, 1
      %p192 = por %p190, %p191
      %p194 = scmp.ne.s32.totalorder %s179, %s193
      %p195 = scmp.eq.s32.totalorder %s22, 0
      %p196 = por %p194, %p195
      %p197 = scmp.le.s32.totalorder 1, %s16
      %p198 = scmp.lt.s32.totalorder %s16, 3
      %p199 = pnand %p197, %p198
      %p200 = pneg %p199
      // Predicated region
      $region9: #{tpu_custom_call.1} parent=5 // pred_check
        _
      $region10: #{tpu_custom_call.1} parent=5 // pred_check_branch
        %202 = sbr.rel (%p199) target = $region12
      $region11: #{tpu_custom_call.1} parent=5 // pred_region
        %s203 = ssub.s32 %s16, 1
        // Predicated region
        $region13: #{tpu_custom_call.1} parent=11 // pred_check
          %p204 = pneg %p63
        $region14: #{tpu_custom_call.1} parent=11 // pred_check_branch
          %206 = sbr.rel (%p204) target = $region16
        $region15: #{tpu_custom_call.1} parent=11 // pred_region
          _
        $region16: #{tpu_custom_call.1} parent=11 // pred_fallthru
          _
        // Predicated region
        $region17: #{tpu_custom_call.1} parent=11 // pred_check
          %p207 = pneg %p84
        $region18: #{tpu_custom_call.1} parent=11 // pred_check_branch
          %209 = sbr.rel (%p207) target = $region20
        $region19: #{tpu_custom_call.1} parent=11 // pred_region
          _
        $region20: #{tpu_custom_call.1} parent=11 // pred_fallthru
          _
        // Predicated region
        $region21: #{tpu_custom_call.1} parent=11 // pred_check
          %p210 = pneg %p105
        $region22: #{tpu_custom_call.1} parent=11 // pred_check_branch
          %212 = sbr.rel (%p210) target = $region24
        $region23: #{tpu_custom_call.1} parent=11 // pred_region
          _
        $region24: #{tpu_custom_call.1} parent=11 // pred_fallthru
          _
        // Predicated region
        $region25: #{tpu_custom_call.1} parent=11 // pred_check
          %p213 = pneg %p126
        $region26: #{tpu_custom_call.1} parent=11 // pred_check_branch
          %215 = sbr.rel (%p213) target = $region28
        $region27: #{tpu_custom_call.1} parent=11 // pred_region
          _
        $region28: #{tpu_custom_call.1} parent=11 // pred_fallthru
          _
        // Predicated region
        $region29: #{tpu_custom_call.1} parent=11 // pred_check
          %p216 = pneg %p147
        $region30: #{tpu_custom_call.1} parent=11 // pred_check_branch
          %218 = sbr.rel (%p216) target = $region32
        $region31: #{tpu_custom_call.1} parent=11 // pred_region
          _
        $region32: #{tpu_custom_call.1} parent=11 // pred_fallthru
          _
      $region12: #{tpu_custom_call.1} parent=5 // pred_fallthru
        _
      %p219 = scmp.lt.s32.totalorder %s16, 2
      // Predicated region
      $region33: #{tpu_custom_call.1} parent=5 // pred_check
        %p220 = pneg %p219
      $region34: #{tpu_custom_call.1} parent=5 // pred_check_branch
        %222 = sbr.rel (%p220) target = $region36
      $region35: #{tpu_custom_call.1} parent=5 // pred_region
        // Predicated region
        $region37: #{tpu_custom_call.1} parent=35 // pred_check
          %p223 = pneg %p36
        $region38: #{tpu_custom_call.1} parent=35 // pred_check_branch
          %225 = sbr.rel (%p223) target = $region40
        $region39: #{tpu_custom_call.1} parent=35 // pred_region
          %s226 = smul.u32 4, %s16
          %p227 = scmp.lt.s32.totalorder %s226, 7
          %s228 = scalar_select %p227, %s226, 7
          %s229 = smul.addr %s228, 2
          %s230 = scalar_lea.vmem %s0, %s229
          %s231 = smul.u32 4, %s16
        $region40: #{tpu_custom_call.1} parent=35 // pred_fallthru
          _
      $region36: #{tpu_custom_call.1} parent=5 // pred_fallthru
        _
      %p232 = scmp.le.s32.totalorder 1, %s16
      %p233 = scmp.lt.s32.totalorder %s16, 3
      %p234 = pnand %p232, %p233
      %p235 = pneg %p234
      // Predicated region
      $region41: #{tpu_custom_call.1} parent=5 // pred_check
        _
      $region42: #{tpu_custom_call.1} parent=5 // pred_check_branch
        %237 = sbr.rel (%p234) target = $region44
      $region43: #{tpu_custom_call.1} parent=5 // pred_region
        %s238 = ssub.s32 %s16, 1
        %s239 = smul.u32 4, %s21
        %p240 = scmp.lt.s32.totalorder %s239, 7
        %s241 = scalar_select %p240, %s239, 7
        %s242 = smul.addr %s241, 2
        %s243 = scalar_lea.vmem %s0, %s242
        %p244 = pneg %p42
        %p245 = pneg %p39
        %p246 = pneg %p63
        %p247 = pneg %p60
        %p248 = pneg %p84
        %p249 = pneg %p81
        %p250 = pneg %p105
        %p251 = pneg %p102
        %p252 = pneg %p126
        %p253 = pneg %p123
        %p254 = pneg %p147
        %p255 = pneg %p144
        %p256 = pneg %p168
        %p257 = pneg %p165
        %p258 = pneg %p189
        %p259 = pneg %p186
        %s260 = smul.u32 4, %s21
        %p261 = scmp.lt.s32.totalorder %s260, 7
        %s262 = scalar_select %p261, %s260, 7
        %s263 = smul.addr %s262, 2
        %s264 = scalar_lea.vmem %s0, %s263
        %s265 = smul.u32 4, %s21
        %p266 = scmp.eq.s32.totalorder %s21, 0
        // Predicated region
        $region45: #{tpu_custom_call.1} parent=43 // pred_check
          %p267 = pneg %p266
        $region46: #{tpu_custom_call.1} parent=43 // pred_check_branch
          %269 = sbr.rel (%p267) target = $region48
        $region47: #{tpu_custom_call.1} parent=43 // pred_region
          %vm270 = vcmask 254976
          %271 = vst.msk [vmem:[#allocation3] sm:$0x3] %vm270, 0.0
          %272 = vst.msk [vmem:[#allocation4] sm:$0x3] %vm270, 0.0
        $region48: #{tpu_custom_call.1} parent=43 // pred_fallthru
          _
        %v273 = vld [vmem:[%s1] sm:$0xff]
        %v274 = vld [vmem:[%s1 + $0x8] sm:$0xff]
        %v275 = vld [vmem:[%s1 + $0x10] sm:$0xff]
        %v276 = vld [vmem:[%s1 + $0x18] sm:$0xff]
        %s277 = smul.u32 %s21, 4
        %v278 = vld [vmem:[#allocation3] sm:$0x3]
        %v279 = vld [vmem:[#allocation4] sm:$0x3]
        %v280 = vld [vmem:[%s264] sm:$0x3]
        %vm281 = vcmask 261120
        %v283 = vsel %vm281, %v278, 0
        %285 = vmatpush.msra.mxu0 0.0
        %286 = vmatpush.msra.mxu0 0.0
        %287 = vmatpush.msra.mxu0 0.0
        %288 = vmatpush.msra.mxu0 0.0
        %289 = vmatpush.msra.mxu0 0.0
        %290 = vmatpush.msra.mxu0 0.0
        %291 = vmatpush.msra.mxu0 0.0
        %292 = vmatpush.msra.mxu0 0.0
        %293 = vmatpush.msra.mxu0 0.0
        %294 = vmatpush.msra.mxu0 0.0
        %295 = vmatpush.msra.mxu0 0.0
        %296 = vmatpush.msra.mxu0 0.0
        %297 = vmatpush.msra.mxu0 %v276
        %298 = vmatpush.msra.mxu0 %v275
        %299 = vmatpush.msra.mxu0 %v274
        %300 = vmatpush.msra.mxu0 %v273
        %301 = vmatmul.f32.gmra.mxu0 %v283
        %v302 = vpop.f32.mrf.mxu0
        %v303 = vadd.f32 0.0, %v302
        %304 = vdwg.mxu0
        %v305 = vadd.f32 %v280, %v303
        %v306 = vtanh.pop %v305
        %v307 = vmul.f32 %v306, 0.5
        %v308 = vadd.f32 %v307, 0.5
        %310 = vrot.lane.b32.xlu0 %v279, 32
        %v311 = vpop.permute.xlu0 %310
        %v313 = vmul.f32 %v308, %v311
        %315 = vrot.lane.b32.xlu0 %v306, 32
        %v316 = vpop.permute.xlu0 %315
        %v318 = vmul.f32 %v308, %v316
        %320 = vrot.lane.b32.xlu0 %v318, 32
        %v321 = vpop.permute.xlu0 %320
        %v323 = vadd.f32 %v313, %v321
        %v324 = vtanh.pop %v323
        %326 = vrot.lane.b32.xlu0 %v324, 32
        %v327 = vpop.permute.xlu0 %326
        %v329 = vmul.f32 %v308, %v327
        %331 = vrot.lane.b32.xlu0 %v329, 64
        %v332 = vpop.permute.xlu0 %331
        %s334 = smul.u32 %s277, 2
        %s335 = scalar_lea.vmem [#allocation2], %s334
        %vm336 = vcmask 254976
        %337 = vst.msk [vmem:[%s335] sm:$0x3] %vm336, %v332
        %s338 = scalar_lea.vmem %s264, 2
        %v339 = vld [vmem:[%s338] sm:$0x3]
        %v340 = vsel %vm281, %v332, 0
        %342 = vmatpush.msra.mxu0 0.0
        %343 = vmatpush.msra.mxu0 0.0
        %344 = vmatpush.msra.mxu0 0.0
        %345 = vmatpush.msra.mxu0 0.0
        %346 = vmatpush.msra.mxu0 0.0
        %347 = vmatpush.msra.mxu0 0.0
        %348 = vmatpush.msra.mxu0 0.0
        %349 = vmatpush.msra.mxu0 0.0
        %350 = vmatpush.msra.mxu0 0.0
        %351 = vmatpush.msra.mxu0 0.0
        %352 = vmatpush.msra.mxu0 0.0
        %353 = vmatpush.msra.mxu0 0.0
        %354 = vmatpush.msra.mxu0 %v276
        %355 = vmatpush.msra.mxu0 %v275
        %356 = vmatpush.msra.mxu0 %v274
        %357 = vmatpush.msra.mxu0 %v273
        %358 = vmatmul.f32.gmra.mxu0 %v340
        %v359 = vpop.f32.mrf.mxu0
        %v360 = vadd.f32 0.0, %v359
        %361 = vdwg.mxu0
        %v362 = vadd.f32 %v339, %v360
        %v363 = vtanh.pop %v362
        %v364 = vmul.f32 %v363, 0.5
        %v365 = vadd.f32 %v364, 0.5
        %v366 = vmul.f32 %v365, %v323
        %368 = vrot.lane.b32.xlu0 %v363, 32
        %v369 = vpop.permute.xlu0 %368
        %v371 = vmul.f32 %v365, %v369
        %373 = vrot.lane.b32.xlu0 %v371, 32
        %v374 = vpop.permute.xlu0 %373
        %v376 = vadd.f32 %v366, %v374
        %v377 = vtanh.pop %v376
        %379 = vrot.lane.b32.xlu0 %v377, 32
        %v380 = vpop.permute.xlu0 %379
        %v382 = vmul.f32 %v365, %v380
        %s383 = sadd.s32 %s277, 1
        %385 = vrot.lane.b32.xlu0 %v382, 64
        %v386 = vpop.permute.xlu0 %385
        %s388 = smul.u32 %s383, 2
        %s389 = scalar_lea.vmem [#allocation2], %s388
        %390 = vst.msk [vmem:[%s389] sm:$0x3] %vm336, %v386
        %s391 = scalar_lea.vmem %s264, 4
        %v392 = vld [vmem:[%s391] sm:$0x3]
        %v393 = vsel %vm281, %v386, 0
        %395 = vmatpush.msra.mxu0 0.0
        %396 = vmatpush.msra.mxu0 0.0
        %397 = vmatpush.msra.mxu0 0.0
        %398 = vmatpush.msra.mxu0 0.0
        %399 = vmatpush.msra.mxu0 0.0
        %400 = vmatpush.msra.mxu0 0.0
        %401 = vmatpush.msra.mxu0 0.0
        %402 = vmatpush.msra.mxu0 0.0
        %403 = vmatpush.msra.mxu0 0.0
        %404 = vmatpush.msra.mxu0 0.0
        %405 = vmatpush.msra.mxu0 0.0
        %406 = vmatpush.msra.mxu0 0.0
        %407 = vmatpush.msra.mxu0 %v276
        %408 = vmatpush.msra.mxu0 %v275
        %409 = vmatpush.msra.mxu0 %v274
        %410 = vmatpush.msra.mxu0 %v273
        %411 = vmatmul.f32.gmra.mxu0 %v393
        %v412 = vpop.f32.mrf.mxu0
        %v413 = vadd.f32 0.0, %v412
        %414 = vdwg.mxu0
        %v415 = vadd.f32 %v392, %v413
        %v416 = vtanh.pop %v415
        %v417 = vmul.f32 %v416, 0.5
        %v418 = vadd.f32 %v417, 0.5
        %v419 = vmul.f32 %v418, %v376
        %421 = vrot.lane.b32.xlu0 %v416, 32
        %v422 = vpop.permute.xlu0 %421
        %v424 = vmul.f32 %v418, %v422
        %426 = vrot.lane.b32.xlu0 %v424, 32
        %v427 = vpop.permute.xlu0 %426
        %v429 = vadd.f32 %v419, %v427
        %v430 = vtanh.pop %v429
        %432 = vrot.lane.b32.xlu0 %v430, 32
        %v433 = vpop.permute.xlu0 %432
        %v435 = vmul.f32 %v418, %v433
        %s436 = sadd.s32 %s277, 2
        %438 = vrot.lane.b32.xlu0 %v435, 64
        %v439 = vpop.permute.xlu0 %438
        %s441 = smul.u32 %s436, 2
        %s442 = scalar_lea.vmem [#allocation2], %s441
        %443 = vst.msk [vmem:[%s442] sm:$0x3] %vm336, %v439
        %s444 = scalar_lea.vmem %s264, 6
        %v445 = vld [vmem:[%s444] sm:$0x3]
        %v446 = vsel %vm281, %v439, 0
        %448 = vmatpush.msra.mxu0 0.0
        %449 = vmatpush.msra.mxu0 0.0
        %450 = vmatpush.msra.mxu0 0.0
        %451 = vmatpush.msra.mxu0 0.0
        %452 = vmatpush.msra.mxu0 0.0
        %453 = vmatpush.msra.mxu0 0.0
        %454 = vmatpush.msra.mxu0 0.0
        %455 = vmatpush.msra.mxu0 0.0
        %456 = vmatpush.msra.mxu0 0.0
        %457 = vmatpush.msra.mxu0 0.0
        %458 = vmatpush.msra.mxu0 0.0
        %459 = vmatpush.msra.mxu0 0.0
        %460 = vmatpush.msra.mxu0 %v276
        %461 = vmatpush.msra.mxu0 %v275
        %462 = vmatpush.msra.mxu0 %v274
        %463 = vmatpush.msra.mxu0 %v273
        %464 = vmatmul.f32.gmra.mxu0 %v446
        %v465 = vpop.f32.mrf.mxu0
        %v466 = vadd.f32 0.0, %v465
        %467 = vdwg.mxu0
        %v468 = vadd.f32 %v445, %v466
        %v469 = vtanh.pop %v468
        %v470 = vmul.f32 %v469, 0.5
        %v471 = vadd.f32 %v470, 0.5
        %v472 = vmul.f32 %v471, %v429
        %474 = vrot.lane.b32.xlu0 %v469, 32
        %v475 = vpop.permute.xlu0 %474
        %v477 = vmul.f32 %v471, %v475
        %479 = vrot.lane.b32.xlu0 %v477, 32
        %v480 = vpop.permute.xlu0 %479
        %v482 = vadd.f32 %v472, %v480
        %v483 = vtanh.pop %v482
        %485 = vrot.lane.b32.xlu0 %v483, 32
        %v486 = vpop.permute.xlu0 %485
        %v488 = vmul.f32 %v471, %v486
        %s489 = sadd.s32 %s277, 3
        %491 = vrot.lane.b32.xlu0 %v488, 64
        %v492 = vpop.permute.xlu0 %491
        %s494 = smul.u32 %s489, 2
        %s495 = scalar_lea.vmem [#allocation2], %s494
        %496 = vst.msk [vmem:[%s495] sm:$0x3] %vm336, %v492
        %497 = vst.msk [vmem:[#allocation3] sm:$0x3] %vm336, %v492
        %499 = vrot.lane.b32.xlu0 %v482, 96
        %v500 = vpop.permute.xlu0 %499
        %502 = vst.msk [vmem:[#allocation4] sm:$0x3] %vm336, %v500
        %p503 = scmp.eq.s32.totalorder %s21, 1
        // Predicated region
        $region49: #{tpu_custom_call.1} parent=43 // pred_check
          %p504 = pneg %p503
        $region50: #{tpu_custom_call.1} parent=43 // pred_check_branch
          %506 = sbr.rel (%p504) target = $region52
        $region51: #{tpu_custom_call.1} parent=43 // pred_region
          %v507 = vld [vmem:[%s2] sm:$0xff]
          %v508 = vld [vmem:[%s2 + $0x8] sm:$0xff]
          %v509 = vld [vmem:[%s2 + $0x10] sm:$0xff]
          %v510 = vld [vmem:[%s2 + $0x18] sm:$0xff]
          %v511 = vld [vmem:[%s3] sm:$0x1]
          %v513 = vperm.slane %v511, 0
          %v515 = vsel %vm281, %v492, 0
          %517 = vmatpush.msra.mxu0 0.0
          %518 = vmatpush.msra.mxu0 0.0
          %519 = vmatpush.msra.mxu0 0.0
          %520 = vmatpush.msra.mxu0 0.0
          %521 = vmatpush.msra.mxu0 0.0
          %522 = vmatpush.msra.mxu0 0.0
          %523 = vmatpush.msra.mxu0 0.0
          %524 = vmatpush.msra.mxu0 0.0
          %525 = vmatpush.msra.mxu0 0.0
          %526 = vmatpush.msra.mxu0 0.0
          %527 = vmatpush.msra.mxu0 0.0
          %528 = vmatpush.msra.mxu0 0.0
          %529 = vmatpush.msra.mxu0 %v510
          %530 = vmatpush.msra.mxu0 %v509
          %531 = vmatpush.msra.mxu0 %v508
          %532 = vmatpush.msra.mxu0 %v507
          %533 = vmatmul.f32.gmra.mxu0 %v515
          %v534 = vpop.f32.mrf.mxu0
          %v535 = vadd.f32 %v513, %v534
          %536 = vdwg.mxu0
          %vm537 = vcmask 58368
          %v538 = vsel %vm537, %v535, -inf
          %539 = vmax.xlane.f32.xlu0 %v538
          %v540 = vpop.xlane.xlu0 %539
          %v541 = vsub.f32 %v535, %v540
          %v542 = vmul.f32 %v541, 1.442695
          %v543 = vpow.pop %v542
          %v544 = vsel %vm537, %v543, 0.0
          %545 = vadd.xlane.f32.xlu0 %v544
          %v546 = vpop.xlane.xlu0 %545
          %v547 = vrcp.pop %v546
          %v548 = vmul.f32 %v546, %v547
          %v549 = vsub.f32 1.0, %v548
          %v550 = vmul.f32 %v547, %v549
          %v551 = vadd.f32 %v547, %v550
          %vm552 = vweird.f32 %v546
          %vm553 = vweird.f32 %v547
          %vm554 = vmor %vm552, %vm553
          %v555 = vsel %vm554, %v547, %v551
          %v556 = vand.u32 2147483647, %v546
          %vm557 = vcmp.eq.f32.partialorder %v556, 8.507059e+37
          %v558 = vand.u32 %v546, 2147483648
          %v559 = vor.u32 1.1754944e-38, %v558
          %v560 = vsel %vm557, %v559, %v555
          %v561 = vmul.f32 %v543, %v560
          %562 = vst.msk [vmem:[#allocation7] sm:$0x3] %vm537, %v561
          %v563 = vld [vmem:[#allocation2] sm:$0x3]
          %565 = vset.pattern.permute.xlu0 0
          %566 = vperm.xlu0 %565, %v561
          %v567 = vpop.permute.xlu0 %566
          %v569 = vmul.f32 %v563, %v567
          %s570 = scalar_lea.vmem [#allocation2], 2
          %v571 = vld [vmem:[%s570] sm:$0x3]
          %572 = vset.pattern.permute.xlu0 1
          %573 = vperm.xlu0 %572, %v561
          %v574 = vpop.permute.xlu0 %573
          %v576 = vmul.f32 %v571, %v574
          %v577 = vadd.f32 %v569, %v576
          %s578 = scalar_lea.vmem [#allocation2], 4
          %v579 = vld [vmem:[%s578] sm:$0x3]
          %580 = vset.pattern.permute.xlu0 2
          %581 = vperm.xlu0 %580, %v561
          %v582 = vpop.permute.xlu0 %581
          %v584 = vmul.f32 %v579, %v582
          %v585 = vadd.f32 %v577, %v584
          %s586 = scalar_lea.vmem [#allocation2], 6
          %v587 = vld [vmem:[%s586] sm:$0x3]
          %588 = vset.pattern.permute.xlu0 3
          %589 = vperm.xlu0 %588, %v561
          %v590 = vpop.permute.xlu0 %589
          %v592 = vmul.f32 %v587, %v590
          %v593 = vadd.f32 %v585, %v592
          %s594 = scalar_lea.vmem [#allocation2], 8
          %v595 = vld [vmem:[%s594] sm:$0x3]
          %596 = vset.pattern.permute.xlu0 4
          %597 = vperm.xlu0 %596, %v561
          %v598 = vpop.permute.xlu0 %597
          %v600 = vmul.f32 %v595, %v598
          %v601 = vadd.f32 %v593, %v600
          %s602 = scalar_lea.vmem [#allocation2], 10
          %v603 = vld [vmem:[%s602] sm:$0x3]
          %604 = vset.pattern.permute.xlu0 5
          %605 = vperm.xlu0 %604, %v561
          %v606 = vpop.permute.xlu0 %605
          %v608 = vmul.f32 %v603, %v606
          %v609 = vadd.f32 %v601, %v608
          %s610 = scalar_lea.vmem [#allocation2], 12
          %v611 = vld [vmem:[%s610] sm:$0x3]
          %612 = vset.pattern.permute.xlu0 6
          %613 = vperm.xlu0 %612, %v561
          %v614 = vpop.permute.xlu0 %613
          %v616 = vmul.f32 %v611, %v614
          %v617 = vadd.f32 %v609, %v616
          %s618 = scalar_lea.vmem [#allocation2], 14
          %v619 = vld [vmem:[%s618] sm:$0x3]
          %620 = vset.pattern.permute.xlu0 7
          %621 = vperm.xlu0 %620, %v561
          %v622 = vpop.permute.xlu0 %621
          %v624 = vmul.f32 %v619, %v622
          %v625 = vadd.f32 %v617, %v624
          %v626 = vld [vmem:[%s4] sm:$0xff]
          %v627 = vld [vmem:[%s4 + $0x8] sm:$0xff]
          %v628 = vld [vmem:[%s4 + $0x10] sm:$0xff]
          %v629 = vld [vmem:[%s4 + $0x18] sm:$0xff]
          %v630 = vld [vmem:[%s5] sm:$0x1]
          %v632 = vperm.slane %v630, 0
          %v635 = vsel %vm281, %v625, 0
          %637 = vmatpush.msra.mxu0 0.0
          %638 = vmatpush.msra.mxu0 0.0
          %639 = vmatpush.msra.mxu0 0.0
          %640 = vmatpush.msra.mxu0 0.0
          %641 = vmatpush.msra.mxu0 0.0
          %642 = vmatpush.msra.mxu0 0.0
          %643 = vmatpush.msra.mxu0 0.0
          %644 = vmatpush.msra.mxu0 0.0
          %645 = vmatpush.msra.mxu0 0.0
          %646 = vmatpush.msra.mxu0 0.0
          %647 = vmatpush.msra.mxu0 0.0
          %648 = vmatpush.msra.mxu0 0.0
          %649 = vmatpush.msra.mxu0 %v629
          %650 = vmatpush.msra.mxu0 %v628
          %651 = vmatpush.msra.mxu0 %v627
          %652 = vmatpush.msra.mxu0 %v626
          %653 = vmatmul.f32.gmra.mxu0 %v635
          %v654 = vpop.f32.mrf.mxu0
          %v655 = vadd.f32 %v632, %v654
          %656 = vdwg.mxu0
          %vm657 = vcmask 74752
          %658 = vst.msk [vmem:[#allocation5] sm:$0x3] %vm657, %v655
        $region52: #{tpu_custom_call.1} parent=43 // pred_fallthru
          _
        // Predicated region
        $region53: #{tpu_custom_call.1} parent=43 // pred_check
          %p659 = pneg %p165
        $region54: #{tpu_custom_call.1} parent=43 // pred_check_branch
          %661 = sbr.rel (%p659) target = $region56
        $region55: #{tpu_custom_call.1} parent=43 // pred_region
          %663 = vsyncadd [#allocation6], 0
          %s665 = sshll.u32 [#allocation5], 4
          %s666 = int_to_ptr.vmem [resolvable:$true] %s665
          %s667 = sshll.u32 %s6, 4
          %s668 = int_to_ptr.hbm [resolvable:$true] %s667
          %670 = dma.vmem_to_hbm [thread:$0]  %s666, 32, %s668, [#allocation6]
        $region56: #{tpu_custom_call.1} parent=43 // pred_fallthru
          _
        // Predicated region
        $region57: #{tpu_custom_call.1} parent=43 // pred_check
          %p671 = pneg %p186
        $region58: #{tpu_custom_call.1} parent=43 // pred_check_branch
          %673 = sbr.rel (%p671) target = $region60
        $region59: #{tpu_custom_call.1} parent=43 // pred_region
          %675 = vsyncadd [#allocation8], 0
          %s677 = sshll.u32 [#allocation7], 4
          %s678 = int_to_ptr.vmem [resolvable:$true] %s677
          %s679 = sshll.u32 %s7, 4
          %s680 = int_to_ptr.hbm [resolvable:$true] %s679
          %682 = dma.vmem_to_hbm [thread:$0]  %s678, 32, %s680, [#allocation8]
        $region60: #{tpu_custom_call.1} parent=43 // pred_fallthru
          _
        // Predicated region
        $region61: #{tpu_custom_call.1} parent=43 // pred_check
          %p683 = pneg %p165
        $region62: #{tpu_custom_call.1} parent=43 // pred_check_branch
          %685 = sbr.rel (%p683) target = $region64
        $region63: #{tpu_custom_call.1} parent=43 // pred_region
          %687 = dma.done [#allocation6], 32
        $region64: #{tpu_custom_call.1} parent=43 // pred_fallthru
          _
        // Predicated region
        $region65: #{tpu_custom_call.1} parent=43 // pred_check
          %p688 = pneg %p186
        $region66: #{tpu_custom_call.1} parent=43 // pred_check_branch
          %690 = sbr.rel (%p688) target = $region68
        $region67: #{tpu_custom_call.1} parent=43 // pred_region
          %692 = dma.done [#allocation8], 32
        $region68: #{tpu_custom_call.1} parent=43 // pred_fallthru
          _
      $region44: #{tpu_custom_call.1} parent=5 // pred_fallthru
        _
      %p693 = scmp.le.s32.totalorder 2, %s16
      // Predicated region
      $region69: #{tpu_custom_call.1} parent=5 // pred_check
        %p694 = pneg %p693
      $region70: #{tpu_custom_call.1} parent=5 // pred_check_branch
        %696 = sbr.rel (%p694) target = $region72
      $region71: #{tpu_custom_call.1} parent=5 // pred_region
        %s697 = ssub.s32 %s16, 2
      $region72: #{tpu_custom_call.1} parent=5 // pred_fallthru
        _
    $region6: #{tpu_custom_call.1} parent=1 // loop_footer
      %s20 = sadd.s32 1, %s16
    $region7: #{tpu_custom_call.1} parent=1 // loop_footer_branch
      %15 = sbr.rel target = $region3
    $region8: #{tpu_custom_call.1} parent=1 // loop_exit
      _
    %698 = vsyncpa [#allocation6], 1
    %s699 = scalar_lea.sflag [#allocation6], 1
    %700 = vsyncpa %s699, 1
    %701 = vsyncpa [#allocation8], 1

</llo_original>
